<compile_context>
chip_gen: v6e
topology: v6e:2x2x1
jax: 0.10.0
libtpu: 0.0.40
codegen_flags: <defaults>
</compile_context>

<pallas_src>
import math
import functools

import jax
import jax.numpy as jnp
from jax import lax
from jax.experimental import pallas as pl
from jax.experimental.pallas import tpu as pltpu


# ---------------------------------------------------------------------------
# Generation-aware scoped-VMEM budget
# ---------------------------------------------------------------------------
@functools.lru_cache(maxsize=None)
def _vmem_limit_bytes():
    """~96 MiB on 128 MiB parts (v5e/v6e), 48 MiB on v7x (64 MiB physical)."""
    default = 48 * 1024 * 1024
    try:
        cap = int(getattr(pltpu.get_tpu_info(), "vmem_capacity_bytes", 0) or 0)
    except Exception:
        cap = 0
    if cap <= 0:
        return default
    return min(cap * 3 // 4, 112 * 1024 * 1024)


# ---------------------------------------------------------------------------
# Parameter packing (hoisted out of the forward path — run once and reuse)
# ---------------------------------------------------------------------------
def pack_qkv_params(params, *, hidden_size, num_attention_heads,
                    all_head_size_sparsified=None, compute_dtype=None):
    """Pack Wq/Wk/Wv ([out,in] torch layout, sliced to the sparsified size)
    into one (H, 3*out_s) matrix (single MXU stream in the projection kernel).
    1/sqrt(head_dim) is folded into Wq/bq in f32 so the attention kernel never
    scales q or the scores.  compute_dtype defaults to bfloat16."""
    if compute_dtype is None:
        compute_dtype = jnp.bfloat16
    head_dim = hidden_size // num_attention_heads
    all_head = num_attention_heads * head_dim
    out_s = all_head if all_head_size_sparsified is None else all_head_size_sparsified
    scale = 1.0 / math.sqrt(head_dim)

    def w(name, s=1.0):
        wt = jnp.asarray(params["w" + name], jnp.float32)[:out_s, :hidden_size]
        return (wt * s).T.astype(compute_dtype)                  # (in, out_s)

    def b(name, s=1.0):
        return jnp.asarray(params["b" + name], jnp.float32)[:out_s] * s

    w_qkv = jnp.concatenate([w("q", scale), w("k"), w("v")], axis=1)  # (H, 3*out_s)
    b_qkv = jnp.concatenate([b("q", scale), b("k"), b("v")]).reshape(1, -1)
    return dict(w_qkv=w_qkv, b_qkv=b_qkv, head_dim=head_dim,
                all_head_size_sparsified=out_s, compute_dtype=compute_dtype)


# ---------------------------------------------------------------------------
# Kernel 1: fused QKV projection  (x @ [Wq|Wk|Wv] + b)  ->  Q, K, V slabs
# ---------------------------------------------------------------------------
def _qkv_proj_kernel(x_ref, w_ref, b_ref, q_ref, k_ref, v_ref):
    # x: (TM, H)   w: (H, 3A)   b: (1, 3A) f32   q/k/v: (TM, A)
    acc = jnp.dot(x_ref[...], w_ref[...], preferred_element_type=jnp.float32)
    acc = acc + b_ref[...]
    a = q_ref.shape[-1]
    q_ref[...] = acc[:, :a].astype(q_ref.dtype)
    k_ref[...] = acc[:, a:2 * a].astype(k_ref.dtype)
    v_ref[...] = acc[:, 2 * a:].astype(v_ref.dtype)


_WEIGHT_SINGLE_BUFFER_OK = True   # lazily probed: pl.Buffered(1) support


def fused_qkv_projection(x2d, w_qkv, b_qkv, *, out_dtype, row_tile=None):
    """x2d: (N, H).  w_qkv: (H, 3A).  b_qkv: (1, 3A) f32.
    Returns (q, k, v) each (N, A) in out_dtype (f32 MXU accumulation)."""
    global _WEIGHT_SINGLE_BUFFER_OK
    N, Hin = x2d.shape
    Hout3 = w_qkv.shape[1]
    A = Hout3 // 3
    if row_tile is None:
        # Bigger tiles amortize the ~0.35us/step overhead when VMEM allows.
        row_tile = 1024 if _vmem_limit_bytes() >= 96 * 1024 * 1024 else 512
    tm = N if N <= row_tile else row_tile
    grid = (pl.cdiv(N, tm),)

    x_spec = pl.BlockSpec((tm, Hin), lambda i: (i, 0))
    b_spec = pl.BlockSpec((1, Hout3), lambda i: (0, 0))
    out_shape = tuple(jax.ShapeDtypeStruct((N, A), out_dtype) for _ in range(3))
    out_specs = tuple(pl.BlockSpec((tm, A), lambda i: (i, 0)) for _ in range(3))

    def run(single_buffer_weight):
        # The weight's block index never changes over the row grid, so double
        # buffering it only wastes a full (H, 3A) copy of VMEM; request a
        # single buffer where supported (biggest win on v7x's 64 MiB VMEM).
        if single_buffer_weight:
            w_spec = pl.BlockSpec((Hin, Hout3), lambda i: (0, 0),
                                  pipeline_mode=pl.Buffered(1))
        else:
            w_spec = pl.BlockSpec((Hin, Hout3), lambda i: (0, 0))
        return pl.pallas_call(
            _qkv_proj_kernel,
            out_shape=out_shape,
            grid=grid,
            in_specs=[x_spec, w_spec, b_spec],
            out_specs=out_specs,
            compiler_params=pltpu.CompilerParams(
                dimension_semantics=("parallel",),
                vmem_limit_bytes=_vmem_limit_bytes()),
        )(x2d, w_qkv, b_qkv)

    if _WEIGHT_SINGLE_BUFFER_OK:
        try:
            return run(True)
        except Exception:      # Buffered(1) unsupported on this jax/TPU combo
            _WEIGHT_SINGLE_BUFFER_OK = False
    return run(False)


# ---------------------------------------------------------------------------
# Kernel 2: multi-head attention, grid = (batch, query-tile)
# ---------------------------------------------------------------------------
def _attn_kernel(q_ref, k_ref, v_ref, mask_ref, ctx_ref, *probs_refs,
                 num_heads, head_dim, heads_per_band, exact_softmax):
    # q: (1, TQ, A)   k, v: (1, S, A)   mask: (1, 1, 1, S) additive f32
    mask = mask_ref[0, 0]                                        # (1, S)

    for band in range(0, num_heads, heads_per_band):             # static loops
        hb = min(heads_per_band, num_heads - band)
        band_ctx = []
        for hh in range(hb):
            h = band + hh
            lo = h * head_dim
            # Ref slices — no full-slab value materialization.  Q is already
            # scaled by 1/sqrt(Dh) (folded into Wq/bq at pack time).
            q = q_ref[0, :, lo:lo + head_dim]                    # (TQ, Dh)
            k = k_ref[0, :, lo:lo + head_dim]                    # (S,  Dh)
            v = v_ref[0, :, lo:lo + head_dim]                    # (S,  Dh)

            # q @ k^T contracting the last dims (no materialized k.T).
            scores = lax.dot_general(q, k, (((1,), (1,)), ((), ())),
                                     preferred_element_type=jnp.float32)
            scores = scores + mask                               # rows broadcast

            m = jnp.max(scores, axis=-1, keepdims=True)
            e = jnp.exp(scores - m)
            denom = jnp.sum(e, axis=-1, keepdims=True)
            # Exact divide when probs are externally visible, EUP approx else.
            probs = e * pl.reciprocal(denom, approx=not exact_softmax)

            band_ctx.append(jnp.dot(probs.astype(v.dtype), v,
                                    preferred_element_type=jnp.float32))
            if probs_refs:
                probs_refs[0][0, h] = probs.astype(probs_refs[0].dtype)

        # One 128-lane-aligned store per head band (two heads/band at Dh=64),
        # so at most `heads_per_band` head results are live — no vreg spill or
        # full-width concatenate.
        band_val = band_ctx[0] if hb == 1 else jnp.concatenate(band_ctx, axis=-1)
        lo = band * head_dim
        ctx_ref[0, :, lo:lo + hb * head_dim] = band_val.astype(ctx_ref.dtype)


def fused_multihead_attention(q, k, v, attention_mask, *, num_heads, head_dim,
                              output_attentions, q_tile=256):
    """q, k, v: (B, S, A) with A = num_heads*head_dim.
       attention_mask: (B, 1, 1, S) additive f32 mask."""
    B, S, A = q.shape
    tq = S if (S <= q_tile or S % q_tile != 0) else q_tile
    # Band heads so stores (and most loads) start at 128-lane boundaries.
    hpb = min(num_heads, max(1, 128 // head_dim)) if 128 % head_dim == 0 else 1

    in_specs = [
        pl.BlockSpec((1, tq, A), lambda b, j: (b, j, 0)),        # Q rows of tile j
        pl.BlockSpec((1, S, A), lambda b, j: (b, 0, 0)),         # full K (revisited)
        pl.BlockSpec((1, S, A), lambda b, j: (b, 0, 0)),         # full V (revisited)
        pl.BlockSpec((1, 1, 1, S), lambda b, j: (b, 0, 0, 0)),
    ]
    out_shapes = [jax.ShapeDtypeStruct((B, S, A), q.dtype)]
    out_specs = [pl.BlockSpec((1, tq, A), lambda b, j: (b, j, 0))]
    if output_attentions:
        out_shapes.append(jax.ShapeDtypeStruct((B, num_heads, S, S), q.dtype))
        out_specs.append(pl.BlockSpec((1, num_heads, tq, S),
                                      lambda b, j: (b, 0, j, 0)))

    kernel = functools.partial(_attn_kernel, num_heads=num_heads,
                               head_dim=head_dim, heads_per_band=hpb,
                               exact_softmax=output_attentions)
    outs = pl.pallas_call(
        kernel,
        out_shape=tuple(out_shapes),
        grid=(B, pl.cdiv(S, tq)),
        in_specs=in_specs,
        out_specs=tuple(out_specs),
        compiler_params=pltpu.CompilerParams(
            dimension_semantics=("parallel", "parallel"),
            vmem_limit_bytes=_vmem_limit_bytes()),
    )(q, k, v, attention_mask)
    if output_attentions:
        return outs[0], outs[1]
    return outs[0], None


# ---------------------------------------------------------------------------
# Module wrapper
# ---------------------------------------------------------------------------
def sparse_bert_self_attention(hidden_states, params=None, attention_mask=None, *,
                               num_attention_heads, output_attentions=False,
                               all_head_size_sparsified=None, compute_dtype=None,
                               packed_qkv=None, q_tile=256):
    """Forward pass of SparseBertSelfAttention (eval mode).
    Pass `packed_qkv=pack_qkv_params(...)` to hoist weight packing out of the
    per-call path (recommended)."""
    B, S, H = hidden_states.shape
    head_dim = H // num_attention_heads

    if packed_qkv is None:
        packed_qkv = pack_qkv_params(
            params, hidden_size=H, num_attention_heads=num_attention_heads,
            all_head_size_sparsified=all_head_size_sparsified,
            compute_dtype=compute_dtype)
    all_head_sp = packed_qkv["all_head_size_sparsified"]
    compute_dtype = packed_qkv["compute_dtype"]
    num_heads_sp = all_head_sp // head_dim

    # SparseBertSelfAttention.forward: tiny sparsified size -> no attention.
    if all_head_sp < 8:
        return (None, None) if output_attentions else (None,)

    x2d = hidden_states.astype(compute_dtype).reshape(B * S, H)
    q2d, k2d, v2d = fused_qkv_projection(
        x2d, packed_qkv["w_qkv"], packed_qkv["b_qkv"], out_dtype=compute_dtype)
    q = q2d.reshape(B, S, all_head_sp)                           # free views
    k = k2d.reshape(B, S, all_head_sp)
    v = v2d.reshape(B, S, all_head_sp)

    if attention_mask is None:
        attention_mask = jnp.zeros((B, 1, 1, S), jnp.float32)
    else:
        attention_mask = jnp.broadcast_to(
            jnp.asarray(attention_mask, jnp.float32), (B, 1, 1, S))

    # TODO(synk): head_mask scaling and attention-probs dropout not implemented.
    context, attentions = fused_multihead_attention(
        q, k, v, attention_mask, num_heads=num_heads_sp, head_dim=head_dim,
        output_attentions=output_attentions, q_tile=q_tile)

    outputs = (context,)
    if output_attentions:
        outputs += (attentions,)
    return outputs


# ---------------------------------------------------------------------------
# Deterministic parameters + pure-JAX reference + smoke test
# ---------------------------------------------------------------------------
def make_params(key, hidden_size):
    ks = jax.random.split(key, 6)
    init = lambda k, shape: (jax.random.normal(k, shape, jnp.float32)
                             * (1.0 / math.sqrt(hidden_size)))
    return {
        "wq": init(ks[0], (hidden_size, hidden_size)),   # [out, in]
        "bq": init(ks[1], (hidden_size,)),
        "wk": init(ks[2], (hidden_size, hidden_size)),
        "bk": init(ks[3], (hidden_size,)),
        "wv": init(ks[4], (hidden_size, hidden_size)),
        "bv": init(ks[5], (hidden_size,)),
    }


def _reference(hidden_states, params, attention_mask, num_heads):
    """Pure-JAX reference mirroring the PyTorch forward (eval mode)."""
    B, S, H = hidden_states.shape
    Dh = H // num_heads
    lin = lambda x, w, b: jnp.einsum("bsh,oh->bso", x, w) + b
    q = lin(hidden_states, params["wq"], params["bq"])
    k = lin(hidden_states, params["wk"], params["bk"])
    v = lin(hidden_states, params["wv"], params["bv"])
    sh = lambda t: t.reshape(B, S, num_heads, Dh).transpose(0, 2, 1, 3)
    q, k, v = sh(q), sh(k), sh(v)
    scores = jnp.einsum("bhqd,bhkd->bhqk", q, k) / math.sqrt(Dh)
    scores = scores + attention_mask
    probs = jax.nn.softmax(scores, axis=-1)
    ctx = jnp.einsum("bhqk,bhkd->bhqd", probs, v)
    ctx = ctx.transpose(0, 2, 1, 3).reshape(B, S, H)
    return ctx, probs


def _make_mask(key, B, S):
    keep = (jax.random.uniform(key, (B, S)) > 0.2).astype(jnp.float32)
    return ((1.0 - keep) * -10000.0).reshape(B, 1, 1, S)


if __name__ == "__main__":
    B, S, H, NH = 2, 8, 32, 4   # batch, seq, hidden, heads (head_dim = 8)

    key = jax.random.PRNGKey(0)
    k_params, k_x, k_mask, k_x2, k_mask2 = jax.random.split(key, 5)

    params = make_params(k_params, H)
    hidden_states = jax.random.normal(k_x, (B, S, H), jnp.float32)
    attention_mask = _make_mask(k_mask, B, S)

    ref_ctx, ref_probs = _reference(hidden_states, params, attention_mask, NH)

    # ---- f32 path, pre-packed weights, with attention probs ----
    packed_f32 = pack_qkv_params(params, hidden_size=H, num_attention_heads=NH,
                                 compute_dtype=jnp.float32)
    context, attentions = sparse_bert_self_attention(
        hidden_states, attention_mask=attention_mask,
        num_attention_heads=NH, output_attentions=True, packed_qkv=packed_f32)
    jax.block_until_ready((context, attentions))
    assert context.shape == (B, S, H)
    assert attentions.shape == (B, NH, S, S)
    assert jnp.allclose(context, ref_ctx, atol=1e-2, rtol=1e-2)
    assert jnp.allclose(attentions, ref_probs, atol=1e-2, rtol=1e-2)

    # ---- f32 path, probs not materialized ----
    (context_only,) = sparse_bert_self_attention(
        hidden_states, attention_mask=attention_mask,
        num_attention_heads=NH, output_attentions=False, packed_qkv=packed_f32)
    jax.block_until_ready(context_only)
    assert jnp.allclose(context_only, ref_ctx, atol=1e-2, rtol=1e-2)

    # ---- default (bf16 compute, f32 accumulation) path, loose tolerance ----
    ctx_bf16, probs_bf16 = sparse_bert_self_attention(
        hidden_states, params, attention_mask,
        num_attention_heads=NH, output_attentions=True)
    jax.block_until_ready((ctx_bf16, probs_bf16))
    assert ctx_bf16.dtype == jnp.bfloat16
    assert jnp.allclose(ctx_bf16.astype(jnp.float32), ref_ctx,
                        atol=1e-1, rtol=1e-1)
    assert jnp.allclose(probs_bf16.astype(jnp.float32), ref_probs,
                        atol=1e-1, rtol=1e-1)

    # ---- longer sequence exercising the query-tile grid axis ----
    S2 = 64
    hs2 = jax.random.normal(k_x2, (B, S2, H), jnp.float32)
    mask2 = _make_mask(k_mask2, B, S2)
    ref_ctx2, ref_probs2 = _reference(hs2, params, mask2, NH)
    ctx2, probs2 = sparse_bert_self_attention(
        hs2, attention_mask=mask2, num_attention_heads=NH,
        output_attentions=True, packed_qkv=packed_f32, q_tile=16)
    jax.block_until_ready((ctx2, probs2))
    assert jnp.allclose(ctx2, ref_ctx2, atol=1e-2, rtol=1e-2)
    assert jnp.allclose(probs2, ref_probs2, atol=1e-2, rtol=1e-2)

    print("KERNEL_OK")
</pallas_src>

<mosaic_0001>
module attributes {stable_mosaic.version = 11 : i64} {
  func.func @_qkv_proj_kernel(%arg0: i32, %arg1: memref<16x32xf32, #tpu.memory_space<vmem>>, %arg2: memref<32x96xf32, #tpu.memory_space<vmem>>, %arg3: memref<1x96xf32, #tpu.memory_space<vmem>>, %arg4: memref<16x32xf32, #tpu.memory_space<vmem>>, %arg5: memref<16x32xf32, #tpu.memory_space<vmem>>, %arg6: memref<16x32xf32, #tpu.memory_space<vmem>>) attributes {dimension_semantics = [#tpu.dimension_semantics<parallel>], iteration_bounds = array<i64: 1>, scalar_prefetch = 0 : i64, scratch_operands = 0 : i64, tpu.core_type = #tpu.core_type<tc>, window_params = [{transform_indices = @transform_0, window_bounds = array<i64: 16, 32>}, {pipeline_mode = #tpu.pipeline_mode<synchronous>, transform_indices = @transform_1, window_bounds = array<i64: 32, 96>}, {pipeline_mode = #tpu.pipeline_mode<synchronous>, transform_indices = @transform_2, window_bounds = array<i64: 1, 96>}, {transform_indices = @transform_3, window_bounds = array<i64: 16, 32>}, {transform_indices = @transform_4, window_bounds = array<i64: 16, 32>}, {transform_indices = @transform_5, window_bounds = array<i64: 16, 32>}]} {
    %c0 = arith.constant 0 : index
    %c0_0 = arith.constant 0 : index
    %0 = vector.load %arg1[%c0, %c0_0] : memref<16x32xf32, #tpu.memory_space<vmem>>, vector<16x32xf32>
    %c0_1 = arith.constant 0 : index
    %c0_2 = arith.constant 0 : index
    %1 = vector.load %arg2[%c0_1, %c0_2] : memref<32x96xf32, #tpu.memory_space<vmem>>, vector<32x96xf32>
    %cst = arith.constant dense<0.000000e+00> : vector<16x96xf32>
    %2 = tpu.matmul %0, %1, %cst {dimension_numbers = #tpu.dot_dimension_numbers<[1], [0], [0], [1], [0, 0, 1, 1], [], []>} : vector<16x32xf32>, vector<32x96xf32>, vector<16x96xf32> -> vector<16x96xf32>
    %c0_3 = arith.constant 0 : index
    %c0_4 = arith.constant 0 : index
    %3 = vector.load %arg3[%c0_3, %c0_4] : memref<1x96xf32, #tpu.memory_space<vmem>>, vector<1x96xf32>
    %4 = vector.broadcast %3 : vector<1x96xf32> to vector<16x96xf32>
    %5 = arith.addf %2, %4 : vector<16x96xf32>
    %6 = vector.extract_strided_slice %5 {offsets = [0, 0], sizes = [16, 32], strides = [1, 1]} : vector<16x96xf32> to vector<16x32xf32>
    %c0_5 = arith.constant 0 : index
    %c0_6 = arith.constant 0 : index
    %7 = vector.load %arg4[%c0_5, %c0_6] : memref<16x32xf32, #tpu.memory_space<vmem>>, vector<16x32xf32>
    tpu.vector_store %arg4[%c0_5, %c0_6], %6 {strides = array<i32>} : memref<16x32xf32, #tpu.memory_space<vmem>>, vector<16x32xf32>,
    %8 = vector.extract_strided_slice %5 {offsets = [0, 32], sizes = [16, 32], strides = [1, 1]} : vector<16x96xf32> to vector<16x32xf32>
    %c0_7 = arith.constant 0 : index
    %c0_8 = arith.constant 0 : index
    %9 = vector.load %arg5[%c0_7, %c0_8] : memref<16x32xf32, #tpu.memory_space<vmem>>, vector<16x32xf32>
    tpu.vector_store %arg5[%c0_7, %c0_8], %8 {strides = array<i32>} : memref<16x32xf32, #tpu.memory_space<vmem>>, vector<16x32xf32>,
    %10 = vector.extract_strided_slice %5 {offsets = [0, 64], sizes = [16, 32], strides = [1, 1]} : vector<16x96xf32> to vector<16x32xf32>
    %c0_9 = arith.constant 0 : index
    %c0_10 = arith.constant 0 : index
    %11 = vector.load %arg6[%c0_9, %c0_10] : memref<16x32xf32, #tpu.memory_space<vmem>>, vector<16x32xf32>
    tpu.vector_store %arg6[%c0_9, %c0_10], %10 {strides = array<i32>} : memref<16x32xf32, #tpu.memory_space<vmem>>, vector<16x32xf32>,
    return
  }
  func.func @transform_0(%arg0: i32) -> (i32, i32) {
    %c0_i32 = arith.constant 0 : i32
    %c0_i32_0 = arith.constant 0 : i32
    return %arg0, %c0_i32 : i32, i32
  }
  func.func @transform_1(%arg0: i32) -> (i32, i32) {
    %c0_i32 = arith.constant 0 : i32
    %c0_i32_0 = arith.constant 0 : i32
    %c0_i32_1 = arith.constant 0 : i32
    return %c0_i32, %c0_i32_0 : i32, i32
  }
  func.func @transform_2(%arg0: i32) -> (i32, i32) {
    %c0_i32 = arith.constant 0 : i32
    %c0_i32_0 = arith.constant 0 : i32
    %c0_i32_1 = arith.constant 0 : i32
    return %c0_i32, %c0_i32_0 : i32, i32
  }
  func.func @transform_3(%arg0: i32) -> (i32, i32) {
    %c0_i32 = arith.constant 0 : i32
    %c0_i32_0 = arith.constant 0 : i32
    return %arg0, %c0_i32 : i32, i32
  }
  func.func @transform_4(%arg0: i32) -> (i32, i32) {
    %c0_i32 = arith.constant 0 : i32
    %c0_i32_0 = arith.constant 0 : i32
    return %arg0, %c0_i32 : i32, i32
  }
  func.func @transform_5(%arg0: i32) -> (i32, i32) {
    %c0_i32 = arith.constant 0 : i32
    %c0_i32_0 = arith.constant 0 : i32
    return %arg0, %c0_i32 : i32, i32
  }
}

module attributes {stable_mosaic.version = 11 : i64} {
  func.func @_qkv_proj_kernel(%arg0: i32, %arg1: memref<16x32xf32, #tpu.memory_space<vmem>>, %arg2: memref<32x96xf32, #tpu.memory_space<vmem>>, %arg3: memref<1x96xf32, #tpu.memory_space<vmem>>, %arg4: memref<16x32xf32, #tpu.memory_space<vmem>>, %arg5: memref<16x32xf32, #tpu.memory_space<vmem>>, %arg6: memref<16x32xf32, #tpu.memory_space<vmem>>) attributes {dimension_semantics = [#tpu.dimension_semantics<parallel>], iteration_bounds = array<i64: 1>, scalar_prefetch = 0 : i64, scratch_operands = 0 : i64, tpu.core_type = #tpu.core_type<tc>, window_params = [{transform_indices = @transform_0, window_bounds = array<i64: 16, 32>}, {pipeline_mode = #tpu.pipeline_mode<synchronous>, transform_indices = @transform_1, window_bounds = array<i64: 32, 96>}, {pipeline_mode = #tpu.pipeline_mode<synchronous>, transform_indices = @transform_2, window_bounds = array<i64: 1, 96>}, {transform_indices = @transform_3, window_bounds = array<i64: 16, 32>}, {transform_indices = @transform_4, window_bounds = array<i64: 16, 32>}, {transform_indices = @transform_5, window_bounds = array<i64: 16, 32>}]} {
    %c0 = arith.constant 0 : index
    %c0_0 = arith.constant 0 : index
    %0 = vector.load %arg1[%c0, %c0_0] : memref<16x32xf32, #tpu.memory_space<vmem>>, vector<16x32xf32>
    %c0_1 = arith.constant 0 : index
    %c0_2 = arith.constant 0 : index
    %1 = vector.load %arg2[%c0_1, %c0_2] : memref<32x96xf32, #tpu.memory_space<vmem>>, vector<32x96xf32>
    %cst = arith.constant dense<0.000000e+00> : vector<16x96xf32>
    %2 = tpu.matmul %0, %1, %cst {dimension_numbers = #tpu.dot_dimension_numbers<[1], [0], [0], [1], [0, 0, 1, 1], [], []>} : vector<16x32xf32>, vector<32x96xf32>, vector<16x96xf32> -> vector<16x96xf32>
    %c0_3 = arith.constant 0 : index
    %c0_4 = arith.constant 0 : index
    %3 = vector.load %arg3[%c0_3, %c0_4] : memref<1x96xf32, #tpu.memory_space<vmem>>, vector<1x96xf32>
    %4 = vector.broadcast %3 : vector<1x96xf32> to vector<16x96xf32>
    %5 = arith.addf %2, %4 : vector<16x96xf32>
    %6 = vector.extract_strided_slice %5 {offsets = [0, 0], sizes = [16, 32], strides = [1, 1]} : vector<16x96xf32> to vector<16x32xf32>
    %c0_5 = arith.constant 0 : index
    %c0_6 = arith.constant 0 : index
    %7 = vector.load %arg4[%c0_5, %c0_6] : memref<16x32xf32, #tpu.memory_space<vmem>>, vector<16x32xf32>
    tpu.vector_store %arg4[%c0_5, %c0_6], %6 {strides = array<i32>} : memref<16x32xf32, #tpu.memory_space<vmem>>, vector<16x32xf32>,
    %8 = vector.extract_strided_slice %5 {offsets = [0, 32], sizes = [16, 32], strides = [1, 1]} : vector<16x96xf32> to vector<16x32xf32>
    %c0_7 = arith.constant 0 : index
    %c0_8 = arith.constant 0 : index
    %9 = vector.load %arg5[%c0_7, %c0_8] : memref<16x32xf32, #tpu.memory_space<vmem>>, vector<16x32xf32>
    tpu.vector_store %arg5[%c0_7, %c0_8], %8 {strides = array<i32>} : memref<16x32xf32, #tpu.memory_space<vmem>>, vector<16x32xf32>,
    %10 = vector.extract_strided_slice %5 {offsets = [0, 64], sizes = [16, 32], strides = [1, 1]} : vector<16x96xf32> to vector<16x32xf32>
    %c0_9 = arith.constant 0 : index
    %c0_10 = arith.constant 0 : index
    %11 = vector.load %arg6[%c0_9, %c0_10] : memref<16x32xf32, #tpu.memory_space<vmem>>, vector<16x32xf32>
    tpu.vector_store %arg6[%c0_9, %c0_10], %10 {strides = array<i32>} : memref<16x32xf32, #tpu.memory_space<vmem>>, vector<16x32xf32>,
    return
  }
  func.func @transform_0(%arg0: i32) -> (i32, i32) {
    %c0_i32 = arith.constant 0 : i32
    %c0_i32_0 = arith.constant 0 : i32
    return %arg0, %c0_i32 : i32, i32
  }
  func.func @transform_1(%arg0: i32) -> (i32, i32) {
    %c0_i32 = arith.constant 0 : i32
    %c0_i32_0 = arith.constant 0 : i32
    %c0_i32_1 = arith.constant 0 : i32
    return %c0_i32, %c0_i32_0 : i32, i32
  }
  func.func @transform_2(%arg0: i32) -> (i32, i32) {
    %c0_i32 = arith.constant 0 : i32
    %c0_i32_0 = arith.constant 0 : i32
    %c0_i32_1 = arith.constant 0 : i32
    return %c0_i32, %c0_i32_0 : i32, i32
  }
  func.func @transform_3(%arg0: i32) -> (i32, i32) {
    %c0_i32 = arith.constant 0 : i32
    %c0_i32_0 = arith.constant 0 : i32
    return %arg0, %c0_i32 : i32, i32
  }
  func.func @transform_4(%arg0: i32) -> (i32, i32) {
    %c0_i32 = arith.constant 0 : i32
    %c0_i32_0 = arith.constant 0 : i32
    return %arg0, %c0_i32 : i32, i32
  }
  func.func @transform_5(%arg0: i32) -> (i32, i32) {
    %c0_i32 = arith.constant 0 : i32
    %c0_i32_0 = arith.constant 0 : i32
    return %arg0, %c0_i32 : i32, i32
  }
}

</mosaic_0001>

<llo_original>
// kernel: tpu_custom_call.1
$region0: #{tpu_custom_call.1}
  #allocation0 [shape = 'u32[]', space=smem, size = 0x4, offset = 0x4, fixed_abs, tag = 'smem constant byte address 0x4 - core index']
  #allocation1 [shape = 'u32[144,128]{1,0:T(1,128)}', space=vmem, size = 0x12000, scoped, tag = 'internal scratch']
  %s0 = inlined_call_operand.hbm [shape: f32[16,32], index: 0, kind: input, shape index: {}]
  %s1 = inlined_call_operand.hbm [shape: f32[32,96], index: 1, kind: input, shape index: {}]
  %s2 = inlined_call_operand.vmem [shape: f32[1,96], index: 2, kind: input, shape index: {}]
  %s3 = inlined_call_operand.hbm [shape: f32[16,32], index: 3, kind: output, shape index: {0}]
  %s4 = inlined_call_operand.hbm [shape: f32[16,32], index: 4, kind: output, shape index: {1}]
  %s5 = inlined_call_operand.hbm [shape: f32[16,32], index: 5, kind: output, shape index: {2}]
  %6 = xla_tuple %s3, %s4, %s5
  %s7 = sld [smem:[#allocation0]]
  $region46: #{tpu_custom_call.1} parent=0
    _
  %s9 = ssub.s32 1, %s7
  %s10 = scalar_select 0, %s9, %s7
  $region1: #{tpu_custom_call.1} parent=0
    #allocation2 [shape = 'u8[8192]{0}', space=vmem, size = 0x2000, scoped, tag = 'input window, operand 0, single buffered']
    #allocation3 [shape = 's32[1]{0}', space=sflag, size = 0x4, scoped, tag = 'scoped memory for tpu_custom_call.1']
    #allocation4 [shape = 's32[1]{0}', space=sflag, size = 0x4, scoped, tag = 'scoped memory for tpu_custom_call.1']
    #allocation5 [shape = 'u8[16384]{0}', space=vmem, size = 0x4000, scoped, tag = 'input window, operand 1, single buffered']
    #allocation6 [shape = 's32[1]{0}', space=sflag, size = 0x4, scoped, tag = 'scoped memory for tpu_custom_call.1']
    #allocation7 [shape = 'u8[8192]{0}', space=vmem, size = 0x2000, scoped, tag = 'output window, operand 0, single buffered']
    #allocation8 [shape = 'u8[8192]{0}', space=vmem, size = 0x2000, scoped, tag = 'output window, operand 1, single buffered']
    #allocation9 [shape = 's32[1]{0}', space=sflag, size = 0x4, scoped, tag = 'scoped memory for tpu_custom_call.1']
    #allocation10 [shape = 'u8[8192]{0}', space=vmem, size = 0x2000, scoped, tag = 'output window, operand 2, single buffered']
    %11 = vsyncpa [#allocation3], 0
    %12 = vsyncpa [#allocation6], 0
    %13 = vsyncpa [#allocation4], 0
    %14 = vsyncpa [#allocation9], 0
    // Predicated region
    $region2: #{tpu_custom_call.1} parent=1 // pred_check
      _
    $region3: #{tpu_custom_call.1} parent=1 // pred_check_branch
      %16 = sbr.rel (0) target = $region5
    $region4: #{tpu_custom_call.1} parent=1 // pred_region
      %s18 = ssub.s32 256, 256
      %19 = vsyncadd [#allocation3], %s18
      %s20 = sshll.u32 [#allocation2], 4
      %s21 = int_to_ptr.vmem [resolvable:$true] %s20
      %26 = dma.hbm_to_vmem [thread:$0]  %s0, 256, %s21, [#allocation3], 128, 128, 8
    $region5: #{tpu_custom_call.1} parent=1 // pred_fallthru
      _
    // Predicated region
    $region6: #{tpu_custom_call.1} parent=1 // pred_check
      _
    $region7: #{tpu_custom_call.1} parent=1 // pred_check_branch
      %28 = sbr.rel (0) target = $region9
    $region8: #{tpu_custom_call.1} parent=1 // pred_region
      %s30 = ssub.s32 512, 512
      %31 = vsyncadd [#allocation6], %s30
      %s32 = sshll.u32 [#allocation5], 4
      %s33 = int_to_ptr.vmem [resolvable:$true] %s32
      %38 = dma.hbm_to_vmem [thread:$0]  %s1, 512, %s33, [#allocation6], 128, 128, 8
    $region9: #{tpu_custom_call.1} parent=1 // pred_fallthru
      _
    // Predicated region
    $region10: #{tpu_custom_call.1} parent=1 // pred_check
      _
    $region11: #{tpu_custom_call.1} parent=1 // pred_check_branch
      %40 = sbr.rel (0) target = $region13
    $region12: #{tpu_custom_call.1} parent=1 // pred_region
      _
    $region13: #{tpu_custom_call.1} parent=1 // pred_fallthru
      _
    // Predicated region
    $region14: #{tpu_custom_call.1} parent=1 // pred_check
      _
    $region15: #{tpu_custom_call.1} parent=1 // pred_check_branch
      %42 = sbr.rel (0) target = $region17
    $region16: #{tpu_custom_call.1} parent=1 // pred_region
      %43 = dma.done [#allocation3], 256
    $region17: #{tpu_custom_call.1} parent=1 // pred_fallthru
      _
    // Predicated region
    $region18: #{tpu_custom_call.1} parent=1 // pred_check
      _
    $region19: #{tpu_custom_call.1} parent=1 // pred_check_branch
      %45 = sbr.rel (0) target = $region21
    $region20: #{tpu_custom_call.1} parent=1 // pred_region
      %46 = dma.done [#allocation6], 512
    $region21: #{tpu_custom_call.1} parent=1 // pred_fallthru
      _
    %v47 = vld [vmem:[#allocation2] sm:$0xff]
    %v48 = vld [vmem:[#allocation2 + $0x8] sm:$0xff]
    %v49 = vld [vmem:[#allocation5] sm:$0xff]
    %v50 = vld [vmem:[#allocation5 + $0x8] sm:$0xff]
    %v51 = vld [vmem:[#allocation5 + $0x10] sm:$0xff]
    %v52 = vld [vmem:[#allocation5 + $0x18] sm:$0xff]
    %v53 = vld [vmem:[%s2] sm:$0x1]
    %v55 = vlaneseq
    %v56 = vshrl.u32 %v55, 7
    %v57 = vsub.s32 0, %v56
    %v58 = vrot.slane %v53, %v57
    %vm60 = vcmask 261120
    %v62 = vsel %vm60, %v47, 0
    %v65 = vsel %vm60, %v48, 0
    %67 = vmatprep.subr.mxu0 0.0
    %68 = vmatpush1.msra.mxu0 0.0
    %69 = vmatprep.subr.mxu0 0.0
    %70 = vmatpush1.msra.mxu0 0.0
    %71 = vmatprep.subr.mxu0 0.0
    %72 = vmatpush1.msra.mxu0 0.0
    %73 = vmatprep.subr.mxu0 0.0
    %74 = vmatpush1.msra.mxu0 0.0
    %75 = vmatprep.subr.mxu0 0.0
    %76 = vmatpush1.msra.mxu0 0.0
    %77 = vmatprep.subr.mxu0 0.0
    %78 = vmatpush1.msra.mxu0 0.0
    %79 = vmatprep.subr.mxu0 0.0
    %80 = vmatpush1.msra.mxu0 0.0
    %81 = vmatprep.subr.mxu0 0.0
    %82 = vmatpush1.msra.mxu0 0.0
    %83 = vmatprep.subr.mxu0 0.0
    %84 = vmatpush1.msra.mxu0 0.0
    %85 = vmatprep.subr.mxu0 0.0
    %86 = vmatpush1.msra.mxu0 0.0
    %87 = vmatprep.subr.mxu0 0.0
    %88 = vmatpush1.msra.mxu0 0.0
    %89 = vmatprep.subr.mxu0 0.0
    %90 = vmatpush1.msra.mxu0 0.0
    %91 = vmatprep.subr.mxu0 0.0
    %92 = vmatpush1.msra.mxu0 %v52
    %93 = vmatprep.subr.mxu0 0.0
    %94 = vmatpush1.msra.mxu0 %v51
    %95 = vmatprep.subr.mxu0 0.0
    %96 = vmatpush1.msra.mxu0 %v50
    %97 = vmatprep.subr.mxu0 0.0
    %98 = vmatpush1.msra.mxu0 %v49
    %99 = vmatprep.subr.mxu0 0.0
    %100 = vmatpush2.msra.mxu0 0.0
    %101 = vmatprep.subr.mxu0 0.0
    %102 = vmatpush2.msra.mxu0 0.0
    %103 = vmatprep.subr.mxu0 0.0
    %104 = vmatpush2.msra.mxu0 0.0
    %105 = vmatprep.subr.mxu0 0.0
    %106 = vmatpush2.msra.mxu0 0.0
    %107 = vmatprep.subr.mxu0 0.0
    %108 = vmatpush2.msra.mxu0 0.0
    %109 = vmatprep.subr.mxu0 0.0
    %110 = vmatpush2.msra.mxu0 0.0
    %111 = vmatprep.subr.mxu0 0.0
    %112 = vmatpush2.msra.mxu0 0.0
    %113 = vmatprep.subr.mxu0 0.0
    %114 = vmatpush2.msra.mxu0 0.0
    %115 = vmatprep.subr.mxu0 0.0
    %116 = vmatpush2.msra.mxu0 0.0
    %117 = vmatprep.subr.mxu0 0.0
    %118 = vmatpush2.msra.mxu0 0.0
    %119 = vmatprep.subr.mxu0 0.0
    %120 = vmatpush2.msra.mxu0 0.0
    %121 = vmatprep.subr.mxu0 0.0
    %122 = vmatpush2.msra.mxu0 0.0
    %123 = vmatprep.subr.mxu0 0.0
    %124 = vmatpush2.msra.mxu0 0.0
    %125 = vmatprep.subr.mxu0 0.0
    %126 = vmatpush2.msra.mxu0 0.0
    %127 = vmatprep.subr.mxu0 0.0
    %128 = vmatpush2.msra.mxu0 0.0
    %129 = vmatprep.subr.mxu0 0.0
    %130 = vmatpush2.msra.mxu0 0.0
    %131 = vmatprep.mubr.f32.mxu0 0.0
    %132 = vmatmul.mubr.f32.gmra.mxu0 %v62
    %v133 = vpop.f32.mrf.mxu0
    %v134 = vadd.f32 %v58, %v133
    %v135 = vpop.f32.mrf.mxu0
    %136 = vmatprep.mubr.f32.mxu0 0.0
    %137 = vmatmul.mubr.f32.gmra.mxu0 %v65
    %v138 = vpop.f32.mrf.mxu0
    %v139 = vadd.f32 %v58, %v138
    %v140 = vpop.f32.mrf.mxu0
    %141 = vdwg.mxu0
    %142 = vst.msk [vmem:[#allocation7] sm:$0xff] %vm60, %v134
    %143 = vst.msk [vmem:[#allocation7 + $0x8] sm:$0xff] %vm60, %v139
    %146 = vrot.lane.b32.xlu0 %v134, 96
    %v147 = vpop.permute.xlu0 %146
    %148 = vrot.lane.b32.xlu0 %v139, 96
    %v149 = vpop.permute.xlu0 %148
    %152 = vst.msk [vmem:[#allocation8] sm:$0xff] %vm60, %v147
    %153 = vst.msk [vmem:[#allocation8 + $0x8] sm:$0xff] %vm60, %v149
    %154 = vrot.lane.b32.xlu0 %v134, 64
    %v155 = vpop.permute.xlu0 %154
    %156 = vrot.lane.b32.xlu0 %v139, 64
    %v157 = vpop.permute.xlu0 %156
    %160 = vst.msk [vmem:[#allocation10] sm:$0xff] %vm60, %v155
    %161 = vst.msk [vmem:[#allocation10 + $0x8] sm:$0xff] %vm60, %v157
    // Predicated region
    $region22: #{tpu_custom_call.1} parent=1 // pred_check
      _
    $region23: #{tpu_custom_call.1} parent=1 // pred_check_branch
      %163 = sbr.rel (0) target = $region25
    $region24: #{tpu_custom_call.1} parent=1 // pred_region
      %s165 = ssub.s32 256, 256
      %166 = vsyncadd [#allocation4], %s165
      %s167 = sshll.u32 [#allocation7], 4
      %s168 = int_to_ptr.vmem [resolvable:$true] %s167
      %173 = dma.vmem_to_hbm [thread:$0]  %s168, 256, %s3, [#allocation4], 128, 128, 8
    $region25: #{tpu_custom_call.1} parent=1 // pred_fallthru
      _
    // Predicated region
    $region26: #{tpu_custom_call.1} parent=1 // pred_check
      _
    $region27: #{tpu_custom_call.1} parent=1 // pred_check_branch
      %175 = sbr.rel (0) target = $region29
    $region28: #{tpu_custom_call.1} parent=1 // pred_region
      %s177 = ssub.s32 256, 256
      %178 = vsyncadd [#allocation9], %s177
      %s179 = sshll.u32 [#allocation8], 4
      %s180 = int_to_ptr.vmem [resolvable:$true] %s179
      %185 = dma.vmem_to_hbm [thread:$0]  %s180, 256, %s4, [#allocation9], 128, 128, 8
    $region29: #{tpu_custom_call.1} parent=1 // pred_fallthru
      _
    // Predicated region
    $region30: #{tpu_custom_call.1} parent=1 // pred_check
      _
    $region31: #{tpu_custom_call.1} parent=1 // pred_check_branch
      %187 = sbr.rel (0) target = $region33
    $region32: #{tpu_custom_call.1} parent=1 // pred_region
      %s189 = ssub.s32 256, 256
      %190 = vsyncadd [#allocation9], %s189
      %s191 = sshll.u32 [#allocation10], 4
      %s192 = int_to_ptr.vmem [resolvable:$true] %s191
      %197 = dma.vmem_to_hbm [thread:$0]  %s192, 256, %s5, [#allocation9], 128, 128, 8
    $region33: #{tpu_custom_call.1} parent=1 // pred_fallthru
      _
    // Predicated region
    $region34: #{tpu_custom_call.1} parent=1 // pred_check
      _
    $region35: #{tpu_custom_call.1} parent=1 // pred_check_branch
      %199 = sbr.rel (0) target = $region37
    $region36: #{tpu_custom_call.1} parent=1 // pred_region
      %200 = dma.done [#allocation4], 256
    $region37: #{tpu_custom_call.1} parent=1 // pred_fallthru
      _
    // Predicated region
    $region38: #{tpu_custom_call.1} parent=1 // pred_check
      _
    $region39: #{tpu_custom_call.1} parent=1 // pred_check_branch
      %202 = sbr.rel (0) target = $region41
    $region40: #{tpu_custom_call.1} parent=1 // pred_region
      %203 = dma.done [#allocation9], 256
    $region41: #{tpu_custom_call.1} parent=1 // pred_fallthru
      _
    // Predicated region
    $region42: #{tpu_custom_call.1} parent=1 // pred_check
      _
    $region43: #{tpu_custom_call.1} parent=1 // pred_check_branch
      %205 = sbr.rel (0) target = $region45
    $region44: #{tpu_custom_call.1} parent=1 // pred_region
      %206 = dma.done [#allocation9], 256
    $region45: #{tpu_custom_call.1} parent=1 // pred_fallthru
      _
    %207 = vsyncpa [#allocation3], 1
    %208 = vsyncpa [#allocation6], 1
    %209 = vsyncpa [#allocation4], 1
    %210 = vsyncpa [#allocation9], 1

// kernel: tpu_custom_call.1
$region0: #{tpu_custom_call.1}
  #allocation0 [shape = 'u32[]', space=smem, size = 0x4, offset = 0x4, fixed_abs, tag = 'smem constant byte address 0x4 - core index']
  #allocation1 [shape = 'u32[144,128]{1,0:T(1,128)}', space=vmem, size = 0x12000, scoped, tag = 'internal scratch']
  %s0 = inlined_call_operand.hbm [shape: f32[16,32], index: 0, kind: input, shape index: {}]
  %s1 = inlined_call_operand.hbm [shape: f32[32,96], index: 1, kind: input, shape index: {}]
  %s2 = inlined_call_operand.vmem [shape: f32[1,96], index: 2, kind: input, shape index: {}]
  %s3 = inlined_call_operand.hbm [shape: f32[16,32], index: 3, kind: output, shape index: {0}]
  %s4 = inlined_call_operand.hbm [shape: f32[16,32], index: 4, kind: output, shape index: {1}]
  %s5 = inlined_call_operand.hbm [shape: f32[16,32], index: 5, kind: output, shape index: {2}]
  %6 = xla_tuple %s3, %s4, %s5
  %s7 = sld [smem:[#allocation0]]
  $region46: #{tpu_custom_call.1} parent=0
    _
  %s9 = ssub.s32 1, %s7
  %s10 = scalar_select 0, %s9, %s7
  $region1: #{tpu_custom_call.1} parent=0
    #allocation2 [shape = 'u8[8192]{0}', space=vmem, size = 0x2000, scoped, tag = 'input window, operand 0, single buffered']
    #allocation3 [shape = 's32[1]{0}', space=sflag, size = 0x4, scoped, tag = 'scoped memory for tpu_custom_call.1']
    #allocation4 [shape = 's32[1]{0}', space=sflag, size = 0x4, scoped, tag = 'scoped memory for tpu_custom_call.1']
    #allocation5 [shape = 'u8[16384]{0}', space=vmem, size = 0x4000, scoped, tag = 'input window, operand 1, single buffered']
    #allocation6 [shape = 's32[1]{0}', space=sflag, size = 0x4, scoped, tag = 'scoped memory for tpu_custom_call.1']
    #allocation7 [shape = 'u8[8192]{0}', space=vmem, size = 0x2000, scoped, tag = 'output window, operand 0, single buffered']
    #allocation8 [shape = 'u8[8192]{0}', space=vmem, size = 0x2000, scoped, tag = 'output window, operand 1, single buffered']
    #allocation9 [shape = 's32[1]{0}', space=sflag, size = 0x4, scoped, tag = 'scoped memory for tpu_custom_call.1']
    #allocation10 [shape = 'u8[8192]{0}', space=vmem, size = 0x2000, scoped, tag = 'output window, operand 2, single buffered']
    %11 = vsyncpa [#allocation3], 0
    %12 = vsyncpa [#allocation6], 0
    %13 = vsyncpa [#allocation4], 0
    %14 = vsyncpa [#allocation9], 0
    // Predicated region
    $region2: #{tpu_custom_call.1} parent=1 // pred_check
      _
    $region3: #{tpu_custom_call.1} parent=1 // pred_check_branch
      %16 = sbr.rel (0) target = $region5
    $region4: #{tpu_custom_call.1} parent=1 // pred_region
      %s18 = ssub.s32 256, 256
      %19 = vsyncadd [#allocation3], %s18
      %s20 = sshll.u32 [#allocation2], 4
      %s21 = int_to_ptr.vmem [resolvable:$true] %s20
      %26 = dma.hbm_to_vmem [thread:$0]  %s0, 256, %s21, [#allocation3], 128, 128, 8
    $region5: #{tpu_custom_call.1} parent=1 // pred_fallthru
      _
    // Predicated region
    $region6: #{tpu_custom_call.1} parent=1 // pred_check
      _
    $region7: #{tpu_custom_call.1} parent=1 // pred_check_branch
      %28 = sbr.rel (0) target = $region9
    $region8: #{tpu_custom_call.1} parent=1 // pred_region
      %s30 = ssub.s32 512, 512
      %31 = vsyncadd [#allocation6], %s30
      %s32 = sshll.u32 [#allocation5], 4
      %s33 = int_to_ptr.vmem [resolvable:$true] %s32
      %38 = dma.hbm_to_vmem [thread:$0]  %s1, 512, %s33, [#allocation6], 128, 128, 8
    $region9: #{tpu_custom_call.1} parent=1 // pred_fallthru
      _
    // Predicated region
    $region10: #{tpu_custom_call.1} parent=1 // pred_check
      _
    $region11: #{tpu_custom_call.1} parent=1 // pred_check_branch
      %40 = sbr.rel (0) target = $region13
    $region12: #{tpu_custom_call.1} parent=1 // pred_region
      _
    $region13: #{tpu_custom_call.1} parent=1 // pred_fallthru
      _
    // Predicated region
    $region14: #{tpu_custom_call.1} parent=1 // pred_check
      _
    $region15: #{tpu_custom_call.1} parent=1 // pred_check_branch
      %42 = sbr.rel (0) target = $region17
    $region16: #{tpu_custom_call.1} parent=1 // pred_region
      %43 = dma.done [#allocation3], 256
    $region17: #{tpu_custom_call.1} parent=1 // pred_fallthru
      _
    // Predicated region
    $region18: #{tpu_custom_call.1} parent=1 // pred_check
      _
    $region19: #{tpu_custom_call.1} parent=1 // pred_check_branch
      %45 = sbr.rel (0) target = $region21
    $region20: #{tpu_custom_call.1} parent=1 // pred_region
      %46 = dma.done [#allocation6], 512
    $region21: #{tpu_custom_call.1} parent=1 // pred_fallthru
      _
    %v47 = vld [vmem:[#allocation2] sm:$0xff]
    %v48 = vld [vmem:[#allocation2 + $0x8] sm:$0xff]
    %v49 = vld [vmem:[#allocation5] sm:$0xff]
    %v50 = vld [vmem:[#allocation5 + $0x8] sm:$0xff]
    %v51 = vld [vmem:[#allocation5 + $0x10] sm:$0xff]
    %v52 = vld [vmem:[#allocation5 + $0x18] sm:$0xff]
    %v53 = vld [vmem:[%s2] sm:$0x1]
    %v55 = vlaneseq
    %v56 = vshrl.u32 %v55, 7
    %v57 = vsub.s32 0, %v56
    %v58 = vrot.slane %v53, %v57
    %vm60 = vcmask 261120
    %v62 = vsel %vm60, %v47, 0
    %v65 = vsel %vm60, %v48, 0
    %67 = vmatprep.subr.mxu0 0.0
    %68 = vmatpush1.msra.mxu0 0.0
    %69 = vmatprep.subr.mxu0 0.0
    %70 = vmatpush1.msra.mxu0 0.0
    %71 = vmatprep.subr.mxu0 0.0
    %72 = vmatpush1.msra.mxu0 0.0
    %73 = vmatprep.subr.mxu0 0.0
    %74 = vmatpush1.msra.mxu0 0.0
    %75 = vmatprep.subr.mxu0 0.0
    %76 = vmatpush1.msra.mxu0 0.0
    %77 = vmatprep.subr.mxu0 0.0
    %78 = vmatpush1.msra.mxu0 0.0
    %79 = vmatprep.subr.mxu0 0.0
    %80 = vmatpush1.msra.mxu0 0.0
    %81 = vmatprep.subr.mxu0 0.0
    %82 = vmatpush1.msra.mxu0 0.0
    %83 = vmatprep.subr.mxu0 0.0
    %84 = vmatpush1.msra.mxu0 0.0
    %85 = vmatprep.subr.mxu0 0.0
    %86 = vmatpush1.msra.mxu0 0.0
    %87 = vmatprep.subr.mxu0 0.0
    %88 = vmatpush1.msra.mxu0 0.0
    %89 = vmatprep.subr.mxu0 0.0
    %90 = vmatpush1.msra.mxu0 0.0
    %91 = vmatprep.subr.mxu0 0.0
    %92 = vmatpush1.msra.mxu0 %v52
    %93 = vmatprep.subr.mxu0 0.0
    %94 = vmatpush1.msra.mxu0 %v51
    %95 = vmatprep.subr.mxu0 0.0
    %96 = vmatpush1.msra.mxu0 %v50
    %97 = vmatprep.subr.mxu0 0.0
    %98 = vmatpush1.msra.mxu0 %v49
    %99 = vmatprep.subr.mxu0 0.0
    %100 = vmatpush2.msra.mxu0 0.0
    %101 = vmatprep.subr.mxu0 0.0
    %102 = vmatpush2.msra.mxu0 0.0
    %103 = vmatprep.subr.mxu0 0.0
    %104 = vmatpush2.msra.mxu0 0.0
    %105 = vmatprep.subr.mxu0 0.0
    %106 = vmatpush2.msra.mxu0 0.0
    %107 = vmatprep.subr.mxu0 0.0
    %108 = vmatpush2.msra.mxu0 0.0
    %109 = vmatprep.subr.mxu0 0.0
    %110 = vmatpush2.msra.mxu0 0.0
    %111 = vmatprep.subr.mxu0 0.0
    %112 = vmatpush2.msra.mxu0 0.0
    %113 = vmatprep.subr.mxu0 0.0
    %114 = vmatpush2.msra.mxu0 0.0
    %115 = vmatprep.subr.mxu0 0.0
    %116 = vmatpush2.msra.mxu0 0.0
    %117 = vmatprep.subr.mxu0 0.0
    %118 = vmatpush2.msra.mxu0 0.0
    %119 = vmatprep.subr.mxu0 0.0
    %120 = vmatpush2.msra.mxu0 0.0
    %121 = vmatprep.subr.mxu0 0.0
    %122 = vmatpush2.msra.mxu0 0.0
    %123 = vmatprep.subr.mxu0 0.0
    %124 = vmatpush2.msra.mxu0 0.0
    %125 = vmatprep.subr.mxu0 0.0
    %126 = vmatpush2.msra.mxu0 0.0
    %127 = vmatprep.subr.mxu0 0.0
    %128 = vmatpush2.msra.mxu0 0.0
    %129 = vmatprep.subr.mxu0 0.0
    %130 = vmatpush2.msra.mxu0 0.0
    %131 = vmatprep.mubr.f32.mxu0 0.0
    %132 = vmatmul.mubr.f32.gmra.mxu0 %v62
    %v133 = vpop.f32.mrf.mxu0
    %v134 = vadd.f32 %v58, %v133
    %v135 = vpop.f32.mrf.mxu0
    %136 = vmatprep.mubr.f32.mxu0 0.0
    %137 = vmatmul.mubr.f32.gmra.mxu0 %v65
    %v138 = vpop.f32.mrf.mxu0
    %v139 = vadd.f32 %v58, %v138
    %v140 = vpop.f32.mrf.mxu0
    %141 = vdwg.mxu0
    %142 = vst.msk [vmem:[#allocation7] sm:$0xff] %vm60, %v134
    %143 = vst.msk [vmem:[#allocation7 + $0x8] sm:$0xff] %vm60, %v139
    %146 = vrot.lane.b32.xlu0 %v134, 96
    %v147 = vpop.permute.xlu0 %146
    %148 = vrot.lane.b32.xlu0 %v139, 96
    %v149 = vpop.permute.xlu0 %148
    %152 = vst.msk [vmem:[#allocation8] sm:$0xff] %vm60, %v147
    %153 = vst.msk [vmem:[#allocation8 + $0x8] sm:$0xff] %vm60, %v149
    %154 = vrot.lane.b32.xlu0 %v134, 64
    %v155 = vpop.permute.xlu0 %154
    %156 = vrot.lane.b32.xlu0 %v139, 64
    %v157 = vpop.permute.xlu0 %156
    %160 = vst.msk [vmem:[#allocation10] sm:$0xff] %vm60, %v155
    %161 = vst.msk [vmem:[#allocation10 + $0x8] sm:$0xff] %vm60, %v157
    // Predicated region
    $region22: #{tpu_custom_call.1} parent=1 // pred_check
      _
    $region23: #{tpu_custom_call.1} parent=1 // pred_check_branch
      %163 = sbr.rel (0) target = $region25
    $region24: #{tpu_custom_call.1} parent=1 // pred_region
      %s165 = ssub.s32 256, 256
      %166 = vsyncadd [#allocation4], %s165
      %s167 = sshll.u32 [#allocation7], 4
      %s168 = int_to_ptr.vmem [resolvable:$true] %s167
      %173 = dma.vmem_to_hbm [thread:$0]  %s168, 256, %s3, [#allocation4], 128, 128, 8
    $region25: #{tpu_custom_call.1} parent=1 // pred_fallthru
      _
    // Predicated region
    $region26: #{tpu_custom_call.1} parent=1 // pred_check
      _
    $region27: #{tpu_custom_call.1} parent=1 // pred_check_branch
      %175 = sbr.rel (0) target = $region29
    $region28: #{tpu_custom_call.1} parent=1 // pred_region
      %s177 = ssub.s32 256, 256
      %178 = vsyncadd [#allocation9], %s177
      %s179 = sshll.u32 [#allocation8], 4
      %s180 = int_to_ptr.vmem [resolvable:$true] %s179
      %185 = dma.vmem_to_hbm [thread:$0]  %s180, 256, %s4, [#allocation9], 128, 128, 8
    $region29: #{tpu_custom_call.1} parent=1 // pred_fallthru
      _
    // Predicated region
    $region30: #{tpu_custom_call.1} parent=1 // pred_check
      _
    $region31: #{tpu_custom_call.1} parent=1 // pred_check_branch
      %187 = sbr.rel (0) target = $region33
    $region32: #{tpu_custom_call.1} parent=1 // pred_region
      %s189 = ssub.s32 256, 256
      %190 = vsyncadd [#allocation9], %s189
      %s191 = sshll.u32 [#allocation10], 4
      %s192 = int_to_ptr.vmem [resolvable:$true] %s191
      %197 = dma.vmem_to_hbm [thread:$0]  %s192, 256, %s5, [#allocation9], 128, 128, 8
    $region33: #{tpu_custom_call.1} parent=1 // pred_fallthru
      _
    // Predicated region
    $region34: #{tpu_custom_call.1} parent=1 // pred_check
      _
    $region35: #{tpu_custom_call.1} parent=1 // pred_check_branch
      %199 = sbr.rel (0) target = $region37
    $region36: #{tpu_custom_call.1} parent=1 // pred_region
      %200 = dma.done [#allocation4], 256
    $region37: #{tpu_custom_call.1} parent=1 // pred_fallthru
      _
    // Predicated region
    $region38: #{tpu_custom_call.1} parent=1 // pred_check
      _
    $region39: #{tpu_custom_call.1} parent=1 // pred_check_branch
      %202 = sbr.rel (0) target = $region41
    $region40: #{tpu_custom_call.1} parent=1 // pred_region
      %203 = dma.done [#allocation9], 256
    $region41: #{tpu_custom_call.1} parent=1 // pred_fallthru
      _
    // Predicated region
    $region42: #{tpu_custom_call.1} parent=1 // pred_check
      _
    $region43: #{tpu_custom_call.1} parent=1 // pred_check_branch
      %205 = sbr.rel (0) target = $region45
    $region44: #{tpu_custom_call.1} parent=1 // pred_region
      %206 = dma.done [#allocation9], 256
    $region45: #{tpu_custom_call.1} parent=1 // pred_fallthru
      _
    %207 = vsyncpa [#allocation3], 1
    %208 = vsyncpa [#allocation6], 1
    %209 = vsyncpa [#allocation4], 1
    %210 = vsyncpa [#allocation9], 1

</llo_original>
